<compile_context>
chip_gen: v7x
topology: tpu7x:2x2x1
jax: 0.10.0
libtpu: 0.0.40
codegen_flags: <defaults>
</compile_context>

<pallas_src>
import functools

import jax
import jax.numpy as jnp
from jax.experimental import pallas as pl
from jax.experimental.pallas import tpu as pltpu

HIDDEN = 128
LANE = 128
TILE_M_MAX = 2048   # rows per batch tile; bf16-x / f32-out working set ~4 MiB at this size
NUM_TC = 2          # v7x TensorCores per chip; extra grid split is harmless on v5e/v6e


def _round_up(n, m):
    return ((n + m - 1) // m) * m


def _cdiv(a, b):
    return (a + b - 1) // b


def actor_kernel(ma_ref,
                 x_ref,
                 w1_ref, b1_ref,
                 w2_ref, b2_ref,
                 w3_ref, b3_ref,
                 w4_ref, b4_ref,
                 out_ref):
    """Fused 4-layer MLP for one batch tile.

    Weights (bf16) are VMEM-resident; matmuls run bf16 x bf16 -> f32 on the MXU;
    bias add / relu / tanh stay in f32 on the VPU/EUP."""
    max_action = ma_ref[0, 0]

    # fc1 + relu  (x is already bf16; its K-dim is zero-padded to 128 lanes — exact)
    h = jnp.dot(x_ref[...], w1_ref[...],
                preferred_element_type=jnp.float32) + b1_ref[...]
    h = jnp.maximum(h, 0.0)

    # fc2 + relu
    h = jnp.dot(h.astype(jnp.bfloat16), w2_ref[...],
                preferred_element_type=jnp.float32) + b2_ref[...]
    h = jnp.maximum(h, 0.0)

    # fc3 + relu
    h = jnp.dot(h.astype(jnp.bfloat16), w3_ref[...],
                preferred_element_type=jnp.float32) + b3_ref[...]
    h = jnp.maximum(h, 0.0)

    # action_out + tanh, scaled by the SMEM scalar; lane-dense f32 store
    a = jnp.dot(h.astype(jnp.bfloat16), w4_ref[...],
                preferred_element_type=jnp.float32) + b4_ref[...]
    out_ref[...] = max_action * jnp.tanh(a)


def prepare_actor_params(params):
    """One-time parameter prep (call once, outside the inference loop):
      * zero-pad the fc1 K-dim and fc4 N-dim to the 128-lane width (exact for a linear),
      * cast weights to bf16 (MXU operands); biases stay f32 (VPU adds)."""
    obs_dim = params["w1"].shape[0]
    act_dim = params["w4"].shape[1]
    obs_p = _round_up(obs_dim, LANE)
    act_p = _round_up(act_dim, LANE)

    w1 = jnp.pad(params["w1"], ((0, obs_p - obs_dim), (0, 0))).astype(jnp.bfloat16)
    w2 = params["w2"].astype(jnp.bfloat16)
    w3 = params["w3"].astype(jnp.bfloat16)
    w4 = jnp.pad(params["w4"], ((0, 0), (0, act_p - act_dim))).astype(jnp.bfloat16)
    b4 = jnp.pad(params["b4"], ((0, 0), (0, act_p - act_dim))).astype(jnp.float32)

    return dict(w1=w1, b1=params["b1"].astype(jnp.float32),
                w2=w2, b2=params["b2"].astype(jnp.float32),
                w3=w3, b3=params["b3"].astype(jnp.float32),
                w4=w4, b4=b4)


@functools.partial(jax.jit, static_argnames=("act_dim",))
def actor_forward(x, prepped, max_action, act_dim):
    """x: (batch, obs_dim) f32. prepped: output of prepare_actor_params().
    max_action: scalar (traced — no recompile per value). act_dim: true action width."""
    batch, obs_dim = x.shape
    obs_p = prepped["w1"].shape[0]
    act_p = prepped["w4"].shape[1]

    # Batch tiling: bound tail padding to <8 rows per tile and guarantee >=2 tiles
    # (when batch >= 16) so the "parallel" axis shards across both v7x TensorCores.
    batch8 = _round_up(batch, 8)
    num_tiles = _cdiv(batch8, TILE_M_MAX)
    if batch8 >= 16:
        num_tiles = max(num_tiles, NUM_TC)
    tile_m = _round_up(_cdiv(batch8, num_tiles), 8)
    grid_m = _cdiv(batch8, tile_m)
    batch_p = grid_m * tile_m

    # Zero-pad ragged batch / lane dims and cast the streamed activations to bf16
    # (halves x's HBM traffic; the MXU still accumulates in f32).
    x_p = jnp.pad(x, ((0, batch_p - batch), (0, obs_p - obs_dim))).astype(jnp.bfloat16)

    ma = jnp.asarray(max_action, dtype=jnp.float32).reshape(1, 1)

    # Whole-array blocks with a constant block index: DMA'd once, VMEM-resident across
    # all batch tiles; only x / out stream through HBM.
    def resident(a):
        return pl.BlockSpec(a.shape, lambda i: tuple(0 for _ in a.shape))

    out_padded = pl.pallas_call(
        actor_kernel,
        out_shape=jax.ShapeDtypeStruct((batch_p, act_p), jnp.float32),
        grid=(grid_m,),
        in_specs=[
            pl.BlockSpec(memory_space=pltpu.MemorySpace.SMEM),   # max_action (1,1) f32
            pl.BlockSpec((tile_m, obs_p), lambda i: (i, 0)),     # x tile (bf16)
            resident(prepped["w1"]), resident(prepped["b1"]),
            resident(prepped["w2"]), resident(prepped["b2"]),
            resident(prepped["w3"]), resident(prepped["b3"]),
            resident(prepped["w4"]), resident(prepped["b4"]),
        ],
        out_specs=pl.BlockSpec((tile_m, act_p), lambda i: (i, 0)),
        compiler_params=pltpu.CompilerParams(
            dimension_semantics=("parallel",)),
    )(ma, x_p,
      prepped["w1"], prepped["b1"],
      prepped["w2"], prepped["b2"],
      prepped["w3"], prepped["b3"],
      prepped["w4"], prepped["b4"])

    # Strip batch / lane padding back to the true output shape.
    return out_padded[:batch, :act_dim]


def init_actor_params(key, obs_dim, act_dim):
    """Deterministic init mimicking PyTorch nn.Linear (U[-1/sqrt(fan_in), 1/sqrt(fan_in)]).

    Weights are stored already transposed to (in, out); biases as (1, out)."""
    def linear(key, fan_in, fan_out):
        kw, kb = jax.random.split(key)
        bound = 1.0 / jnp.sqrt(fan_in)
        w = jax.random.uniform(kw, (fan_in, fan_out), jnp.float32, -bound, bound)
        b = jax.random.uniform(kb, (1, fan_out), jnp.float32, -bound, bound)
        return w, b

    k1, k2, k3, k4 = jax.random.split(key, 4)
    w1, b1 = linear(k1, obs_dim, HIDDEN)
    w2, b2 = linear(k2, HIDDEN, HIDDEN)
    w3, b3 = linear(k3, HIDDEN, HIDDEN)
    w4, b4 = linear(k4, HIDDEN, act_dim)
    return dict(w1=w1, b1=b1, w2=w2, b2=b2, w3=w3, b3=b3, w4=w4, b4=b4)


def actor_forward_ref(x, params, max_action):
    """Pure-JAX f32 reference (matches the PyTorch forward semantics)."""
    h = jax.nn.relu(x @ params["w1"] + params["b1"])
    h = jax.nn.relu(h @ params["w2"] + params["b2"])
    h = jax.nn.relu(h @ params["w3"] + params["b3"])
    return max_action * jnp.tanh(h @ params["w4"] + params["b4"])


def actor_forward_ref_bf16(x, params, max_action):
    """Reference matching the kernel numerics: bf16 matmul operands, f32 accumulate."""
    def mm(a, w):
        return jnp.dot(a.astype(jnp.bfloat16), w.astype(jnp.bfloat16),
                       preferred_element_type=jnp.float32)
    h = jax.nn.relu(mm(x, params["w1"]) + params["b1"])
    h = jax.nn.relu(mm(h, params["w2"]) + params["b2"])
    h = jax.nn.relu(mm(h, params["w3"]) + params["b3"])
    return max_action * jnp.tanh(mm(h, params["w4"]) + params["b4"])


if __name__ == "__main__":
    key = jax.random.PRNGKey(0)
    k_params, k_x, k_x2, k_x3 = jax.random.split(key, 4)

    # Module-consistent small shapes:
    #   args.obs_shape[agent_id] = 16, args.action_shape[agent_id] = 8,
    #   args.high_action = 1.0, batch = 8
    batch, obs_dim, act_dim = 8, 16, 8
    max_action = 1.0

    params = init_actor_params(k_params, obs_dim, act_dim)
    prepped = prepare_actor_params(params)   # one-time padding / bf16 cast

    x = jax.random.normal(k_x, (batch, obs_dim), dtype=jnp.float32)
    actions = jax.block_until_ready(actor_forward(x, prepped, max_action, act_dim))
    assert actions.shape == (batch, act_dim)

    # Tight check vs a bf16-matmul / f32-accumulate reference (kernel numerics).
    assert jnp.allclose(actions, actor_forward_ref_bf16(x, params, max_action),
                        atol=5e-3, rtol=5e-3), "mismatch vs bf16 reference"
    # Loose check vs the full-f32 PyTorch-equivalent reference.
    assert jnp.allclose(actions, actor_forward_ref(x, params, max_action),
                        atol=3e-2, rtol=3e-2), "mismatch vs f32 reference"

    # Non-multiple-of-8 batch: exercises tail padding + the >=2-tile (v7x) grid path.
    x2 = jax.random.normal(k_x2, (10, obs_dim), dtype=jnp.float32)
    a2 = jax.block_until_ready(actor_forward(x2, prepped, max_action, act_dim))
    assert a2.shape == (10, act_dim)
    assert jnp.allclose(a2, actor_forward_ref_bf16(x2, params, max_action),
                        atol=5e-3, rtol=5e-3), "mismatch vs bf16 reference (batch=10)"

    # Larger batch: multiple tiles with a partially-filled last tile.
    x3 = jax.random.normal(k_x3, (40, obs_dim), dtype=jnp.float32)
    a3 = jax.block_until_ready(actor_forward(x3, prepped, max_action, act_dim))
    assert a3.shape == (40, act_dim)
    assert jnp.allclose(a3, actor_forward_ref_bf16(x3, params, max_action),
                        atol=5e-3, rtol=5e-3), "mismatch vs bf16 reference (batch=40)"

    print("KERNEL_OK")
</pallas_src>

<mosaic_0001>
module attributes {stable_mosaic.version = 11 : i64} {
  func.func @actor_kernel(%arg0: i32, %arg1: memref<1x1xf32, #tpu.memory_space<smem>>, %arg2: memref<8x128xbf16, #tpu.memory_space<vmem>>, %arg3: memref<128x128xbf16, #tpu.memory_space<vmem>>, %arg4: memref<1x128xf32, #tpu.memory_space<vmem>>, %arg5: memref<128x128xbf16, #tpu.memory_space<vmem>>, %arg6: memref<1x128xf32, #tpu.memory_space<vmem>>, %arg7: memref<128x128xbf16, #tpu.memory_space<vmem>>, %arg8: memref<1x128xf32, #tpu.memory_space<vmem>>, %arg9: memref<128x128xbf16, #tpu.memory_space<vmem>>, %arg10: memref<1x128xf32, #tpu.memory_space<vmem>>, %arg11: memref<8x128xf32, #tpu.memory_space<vmem>>) attributes {dimension_semantics = [#tpu.dimension_semantics<parallel>], iteration_bounds = array<i64: 1>, scalar_prefetch = 0 : i64, scratch_operands = 0 : i64, tpu.core_type = #tpu.core_type<tc>, window_params = [{transform_indices = @transform_0, window_bounds = array<i64: 1, 1>}, {transform_indices = @transform_1, window_bounds = array<i64: 8, 128>}, {pipeline_mode = #tpu.pipeline_mode<synchronous>, transform_indices = @transform_2, window_bounds = array<i64: 128, 128>}, {pipeline_mode = #tpu.pipeline_mode<synchronous>, transform_indices = @transform_3, window_bounds = array<i64: 1, 128>}, {pipeline_mode = #tpu.pipeline_mode<synchronous>, transform_indices = @transform_4, window_bounds = array<i64: 128, 128>}, {pipeline_mode = #tpu.pipeline_mode<synchronous>, transform_indices = @transform_5, window_bounds = array<i64: 1, 128>}, {pipeline_mode = #tpu.pipeline_mode<synchronous>, transform_indices = @transform_6, window_bounds = array<i64: 128, 128>}, {pipeline_mode = #tpu.pipeline_mode<synchronous>, transform_indices = @transform_7, window_bounds = array<i64: 1, 128>}, {pipeline_mode = #tpu.pipeline_mode<synchronous>, transform_indices = @transform_8, window_bounds = array<i64: 128, 128>}, {pipeline_mode = #tpu.pipeline_mode<synchronous>, transform_indices = @transform_9, window_bounds = array<i64: 1, 128>}, {transform_indices = @transform_10, window_bounds = array<i64: 8, 128>}]} {
    %c0 = arith.constant 0 : index
    %c0_0 = arith.constant 0 : index
    %0 = memref.load %arg1[%c0, %c0_0] : memref<1x1xf32, #tpu.memory_space<smem>>
    %c0_1 = arith.constant 0 : index
    %c0_2 = arith.constant 0 : index
    %1 = vector.load %arg2[%c0_1, %c0_2] : memref<8x128xbf16, #tpu.memory_space<vmem>>, vector<8x128xbf16>
    %c0_3 = arith.constant 0 : index
    %c0_4 = arith.constant 0 : index
    %2 = vector.load %arg3[%c0_3, %c0_4] : memref<128x128xbf16, #tpu.memory_space<vmem>>, vector<128x128xbf16>
    %cst = arith.constant dense<0.000000e+00> : vector<8x128xf32>
    %3 = tpu.matmul %1, %2, %cst {dimension_numbers = #tpu.dot_dimension_numbers<[1], [0], [0], [1], [0, 0, 1, 1], [], []>} : vector<8x128xbf16>, vector<128x128xbf16>, vector<8x128xf32> -> vector<8x128xf32>
    %c0_5 = arith.constant 0 : index
    %c0_6 = arith.constant 0 : index
    %4 = vector.load %arg4[%c0_5, %c0_6] : memref<1x128xf32, #tpu.memory_space<vmem>>, vector<1x128xf32>
    %5 = vector.broadcast %4 : vector<1x128xf32> to vector<8x128xf32>
    %6 = arith.addf %3, %5 : vector<8x128xf32>
    %cst_7 = arith.constant 0.000000e+00 : f32
    %7 = vector.broadcast %cst_7 : f32 to vector<8x128xf32>
    %8 = arith.maximumf %6, %7 : vector<8x128xf32>
    %9 = arith.truncf %8 : vector<8x128xf32> to vector<8x128xbf16>
    %c0_8 = arith.constant 0 : index
    %c0_9 = arith.constant 0 : index
    %10 = vector.load %arg5[%c0_8, %c0_9] : memref<128x128xbf16, #tpu.memory_space<vmem>>, vector<128x128xbf16>
    %cst_10 = arith.constant dense<0.000000e+00> : vector<8x128xf32>
    %11 = tpu.matmul %9, %10, %cst_10 {dimension_numbers = #tpu.dot_dimension_numbers<[1], [0], [0], [1], [0, 0, 1, 1], [], []>} : vector<8x128xbf16>, vector<128x128xbf16>, vector<8x128xf32> -> vector<8x128xf32>
    %c0_11 = arith.constant 0 : index
    %c0_12 = arith.constant 0 : index
    %12 = vector.load %arg6[%c0_11, %c0_12] : memref<1x128xf32, #tpu.memory_space<vmem>>, vector<1x128xf32>
    %13 = vector.broadcast %12 : vector<1x128xf32> to vector<8x128xf32>
    %14 = arith.addf %11, %13 : vector<8x128xf32>
    %cst_13 = arith.constant 0.000000e+00 : f32
    %15 = vector.broadcast %cst_13 : f32 to vector<8x128xf32>
    %16 = arith.maximumf %14, %15 : vector<8x128xf32>
    %17 = arith.truncf %16 : vector<8x128xf32> to vector<8x128xbf16>
    %c0_14 = arith.constant 0 : index
    %c0_15 = arith.constant 0 : index
    %18 = vector.load %arg7[%c0_14, %c0_15] : memref<128x128xbf16, #tpu.memory_space<vmem>>, vector<128x128xbf16>
    %cst_16 = arith.constant dense<0.000000e+00> : vector<8x128xf32>
    %19 = tpu.matmul %17, %18, %cst_16 {dimension_numbers = #tpu.dot_dimension_numbers<[1], [0], [0], [1], [0, 0, 1, 1], [], []>} : vector<8x128xbf16>, vector<128x128xbf16>, vector<8x128xf32> -> vector<8x128xf32>
    %c0_17 = arith.constant 0 : index
    %c0_18 = arith.constant 0 : index
    %20 = vector.load %arg8[%c0_17, %c0_18] : memref<1x128xf32, #tpu.memory_space<vmem>>, vector<1x128xf32>
    %21 = vector.broadcast %20 : vector<1x128xf32> to vector<8x128xf32>
    %22 = arith.addf %19, %21 : vector<8x128xf32>
    %cst_19 = arith.constant 0.000000e+00 : f32
    %23 = vector.broadcast %cst_19 : f32 to vector<8x128xf32>
    %24 = arith.maximumf %22, %23 : vector<8x128xf32>
    %25 = arith.truncf %24 : vector<8x128xf32> to vector<8x128xbf16>
    %c0_20 = arith.constant 0 : index
    %c0_21 = arith.constant 0 : index
    %26 = vector.load %arg9[%c0_20, %c0_21] : memref<128x128xbf16, #tpu.memory_space<vmem>>, vector<128x128xbf16>
    %cst_22 = arith.constant dense<0.000000e+00> : vector<8x128xf32>
    %27 = tpu.matmul %25, %26, %cst_22 {dimension_numbers = #tpu.dot_dimension_numbers<[1], [0], [0], [1], [0, 0, 1, 1], [], []>} : vector<8x128xbf16>, vector<128x128xbf16>, vector<8x128xf32> -> vector<8x128xf32>
    %c0_23 = arith.constant 0 : index
    %c0_24 = arith.constant 0 : index
    %28 = vector.load %arg10[%c0_23, %c0_24] : memref<1x128xf32, #tpu.memory_space<vmem>>, vector<1x128xf32>
    %29 = vector.broadcast %28 : vector<1x128xf32> to vector<8x128xf32>
    %30 = arith.addf %27, %29 : vector<8x128xf32>
    %31 = math.tanh %30 : vector<8x128xf32>
    %32 = vector.broadcast %0 : f32 to vector<8x128xf32>
    %33 = arith.mulf %32, %31 : vector<8x128xf32>
    %c0_25 = arith.constant 0 : index
    %c0_26 = arith.constant 0 : index
    %34 = vector.load %arg11[%c0_25, %c0_26] : memref<8x128xf32, #tpu.memory_space<vmem>>, vector<8x128xf32>
    tpu.vector_store %arg11[%c0_25, %c0_26], %33 {strides = array<i32>} : memref<8x128xf32, #tpu.memory_space<vmem>>, vector<8x128xf32>,
    return
  }
  func.func @transform_0(%arg0: i32) -> (i32, i32) {
    %c0_i32 = arith.constant 0 : i32
    %c0_i32_0 = arith.constant 0 : i32
    %c0_i32_1 = arith.constant 0 : i32
    return %c0_i32, %c0_i32_0 : i32, i32
  }
  func.func @transform_1(%arg0: i32) -> (i32, i32) {
    %c0_i32 = arith.constant 0 : i32
    %c0_i32_0 = arith.constant 0 : i32
    return %arg0, %c0_i32 : i32, i32
  }
  func.func @transform_2(%arg0: i32) -> (i32, i32) {
    %c0_i32 = arith.constant 0 : i32
    %c0_i32_0 = arith.constant 0 : i32
    %c0_i32_1 = arith.constant 0 : i32
    return %c0_i32, %c0_i32_0 : i32, i32
  }
  func.func @transform_3(%arg0: i32) -> (i32, i32) {
    %c0_i32 = arith.constant 0 : i32
    %c0_i32_0 = arith.constant 0 : i32
    %c0_i32_1 = arith.constant 0 : i32
    return %c0_i32, %c0_i32_0 : i32, i32
  }
  func.func @transform_4(%arg0: i32) -> (i32, i32) {
    %c0_i32 = arith.constant 0 : i32
    %c0_i32_0 = arith.constant 0 : i32
    %c0_i32_1 = arith.constant 0 : i32
    return %c0_i32, %c0_i32_0 : i32, i32
  }
  func.func @transform_5(%arg0: i32) -> (i32, i32) {
    %c0_i32 = arith.constant 0 : i32
    %c0_i32_0 = arith.constant 0 : i32
    %c0_i32_1 = arith.constant 0 : i32
    return %c0_i32, %c0_i32_0 : i32, i32
  }
  func.func @transform_6(%arg0: i32) -> (i32, i32) {
    %c0_i32 = arith.constant 0 : i32
    %c0_i32_0 = arith.constant 0 : i32
    %c0_i32_1 = arith.constant 0 : i32
    return %c0_i32, %c0_i32_0 : i32, i32
  }
  func.func @transform_7(%arg0: i32) -> (i32, i32) {
    %c0_i32 = arith.constant 0 : i32
    %c0_i32_0 = arith.constant 0 : i32
    %c0_i32_1 = arith.constant 0 : i32
    return %c0_i32, %c0_i32_0 : i32, i32
  }
  func.func @transform_8(%arg0: i32) -> (i32, i32) {
    %c0_i32 = arith.constant 0 : i32
    %c0_i32_0 = arith.constant 0 : i32
    %c0_i32_1 = arith.constant 0 : i32
    return %c0_i32, %c0_i32_0 : i32, i32
  }
  func.func @transform_9(%arg0: i32) -> (i32, i32) {
    %c0_i32 = arith.constant 0 : i32
    %c0_i32_0 = arith.constant 0 : i32
    %c0_i32_1 = arith.constant 0 : i32
    return %c0_i32, %c0_i32_0 : i32, i32
  }
  func.func @transform_10(%arg0: i32) -> (i32, i32) {
    %c0_i32 = arith.constant 0 : i32
    %c0_i32_0 = arith.constant 0 : i32
    return %arg0, %c0_i32 : i32, i32
  }
}

</mosaic_0001>

<llo_original>
// kernel: actor_forward.1
$region0: #{actor_forward.1}
  #allocation0 [shape = 'u32[]', space=smem, size = 0x4, offset = 0x4, fixed_abs, tag = 'smem constant byte address 0x4 - core index']
  #allocation1 [shape = 'u32[144,128]{1,0:T(1,128)}', space=vmem, size = 0x12000, scoped, tag = 'internal scratch']
  #allocation2 [shape = 'f32[1,1]{1,0:T(1,128)S(6)}', space=smem, size = 0x200, scoped, tag = 'scoped memory for actor_forward.1']
  %s0 = inlined_call_operand.<no memory space> [shape: f32[1,1], index: 0, kind: input, shape index: {}]
  %s1 = inlined_call_operand.vmem [shape: bf16[8,128], index: 1, kind: input, shape index: {}]
  %s2 = inlined_call_operand.hbm [shape: bf16[128,128], index: 2, kind: input, shape index: {}]
  %s3 = inlined_call_operand.vmem [shape: f32[1,128], index: 3, kind: input, shape index: {}]
  %s4 = inlined_call_operand.hbm [shape: bf16[128,128], index: 4, kind: input, shape index: {}]
  %s5 = inlined_call_operand.vmem [shape: f32[1,128], index: 5, kind: input, shape index: {}]
  %s6 = inlined_call_operand.hbm [shape: bf16[128,128], index: 6, kind: input, shape index: {}]
  %s7 = inlined_call_operand.vmem [shape: f32[1,128], index: 7, kind: input, shape index: {}]
  %s8 = inlined_call_operand.hbm [shape: bf16[128,128], index: 8, kind: input, shape index: {}]
  %s9 = inlined_call_operand.vmem [shape: f32[1,128], index: 9, kind: input, shape index: {}]
  %s10 = inlined_call_operand.hbm [shape: f32[8,128], index: 10, kind: output, shape index: {}]
  %s11 = sld [smem:[#allocation0]]
  $region66: #{actor_forward.1} parent=0
    _
  %s13 = ssub.s32 1, %s11
  %s14 = scalar_select 0, %s13, %s11
  %15 = sst [smem:[#allocation2]] %s0
  $region1: #{actor_forward.1} parent=0
    #allocation3 [shape = 'u8[32768]{0}', space=vmem, size = 0x8000, scoped, tag = 'input window, operand 2, single buffered']
    #allocation4 [shape = 's32[1]{0}', space=sflag, size = 0x4, scoped, tag = 'scoped memory for actor_forward.1']
    #allocation5 [shape = 's32[1]{0}', space=sflag, size = 0x4, scoped, tag = 'scoped memory for actor_forward.1']
    #allocation6 [shape = 'u8[32768]{0}', space=vmem, size = 0x8000, scoped, tag = 'input window, operand 4, single buffered']
    #allocation7 [shape = 's32[1]{0}', space=sflag, size = 0x4, scoped, tag = 'scoped memory for actor_forward.1']
    #allocation8 [shape = 'u8[32768]{0}', space=vmem, size = 0x8000, scoped, tag = 'input window, operand 6, single buffered']
    #allocation9 [shape = 'u8[32768]{0}', space=vmem, size = 0x8000, scoped, tag = 'input window, operand 8, single buffered']
    #allocation10 [shape = 's32[1]{0}', space=sflag, size = 0x4, scoped, tag = 'scoped memory for actor_forward.1']
    #allocation11 [shape = 'u8[4096]{0}', space=vmem, size = 0x1000, scoped, tag = 'output window, operand 0, single buffered']
    %16 = vsyncpa [#allocation4], 0
    %17 = vsyncpa [#allocation7], 0
    %18 = vsyncpa [#allocation10], 0
    %19 = vsyncpa [#allocation5], 0
    // Predicated region
    $region2: #{actor_forward.1} parent=1 // pred_check
      _
    $region3: #{actor_forward.1} parent=1 // pred_check_branch
      %21 = sbr.rel (0) target = $region5
    $region4: #{actor_forward.1} parent=1 // pred_region
      _
    $region5: #{actor_forward.1} parent=1 // pred_fallthru
      _
    // Predicated region
    $region6: #{actor_forward.1} parent=1 // pred_check
      _
    $region7: #{actor_forward.1} parent=1 // pred_check_branch
      %23 = sbr.rel (0) target = $region9
    $region8: #{actor_forward.1} parent=1 // pred_region
      _
    $region9: #{actor_forward.1} parent=1 // pred_fallthru
      _
    // Predicated region
    $region10: #{actor_forward.1} parent=1 // pred_check
      _
    $region11: #{actor_forward.1} parent=1 // pred_check_branch
      %25 = sbr.rel (0) target = $region13
    $region12: #{actor_forward.1} parent=1 // pred_region
      %s27 = ssub.s32 1024, 1024
      %28 = vsyncadd [#allocation4], %s27
      %s29 = sshll.u32 [#allocation3], 4
      %s30 = int_to_ptr.vmem [resolvable:$true] %s29
      %35 = dma.hbm_to_vmem [thread:$0]  %s2, 1024, %s30, [#allocation4], 64, 64, 4
    $region13: #{actor_forward.1} parent=1 // pred_fallthru
      _
    // Predicated region
    $region14: #{actor_forward.1} parent=1 // pred_check
      _
    $region15: #{actor_forward.1} parent=1 // pred_check_branch
      %37 = sbr.rel (0) target = $region17
    $region16: #{actor_forward.1} parent=1 // pred_region
      _
    $region17: #{actor_forward.1} parent=1 // pred_fallthru
      _
    // Predicated region
    $region18: #{actor_forward.1} parent=1 // pred_check
      _
    $region19: #{actor_forward.1} parent=1 // pred_check_branch
      %39 = sbr.rel (0) target = $region21
    $region20: #{actor_forward.1} parent=1 // pred_region
      %s41 = ssub.s32 1024, 1024
      %42 = vsyncadd [#allocation7], %s41
      %s43 = sshll.u32 [#allocation6], 4
      %s44 = int_to_ptr.vmem [resolvable:$true] %s43
      %49 = dma.hbm_to_vmem [thread:$0]  %s4, 1024, %s44, [#allocation7], 64, 64, 4
    $region21: #{actor_forward.1} parent=1 // pred_fallthru
      _
    // Predicated region
    $region22: #{actor_forward.1} parent=1 // pred_check
      _
    $region23: #{actor_forward.1} parent=1 // pred_check_branch
      %51 = sbr.rel (0) target = $region25
    $region24: #{actor_forward.1} parent=1 // pred_region
      _
    $region25: #{actor_forward.1} parent=1 // pred_fallthru
      _
    // Predicated region
    $region26: #{actor_forward.1} parent=1 // pred_check
      _
    $region27: #{actor_forward.1} parent=1 // pred_check_branch
      %53 = sbr.rel (0) target = $region29
    $region28: #{actor_forward.1} parent=1 // pred_region
      %s55 = ssub.s32 1024, 1024
      %56 = vsyncadd [#allocation7], %s55
      %s57 = sshll.u32 [#allocation8], 4
      %s58 = int_to_ptr.vmem [resolvable:$true] %s57
      %63 = dma.hbm_to_vmem [thread:$0]  %s6, 1024, %s58, [#allocation7], 64, 64, 4
    $region29: #{actor_forward.1} parent=1 // pred_fallthru
      _
    // Predicated region
    $region30: #{actor_forward.1} parent=1 // pred_check
      _
    $region31: #{actor_forward.1} parent=1 // pred_check_branch
      %65 = sbr.rel (0) target = $region33
    $region32: #{actor_forward.1} parent=1 // pred_region
      _
    $region33: #{actor_forward.1} parent=1 // pred_fallthru
      _
    // Predicated region
    $region34: #{actor_forward.1} parent=1 // pred_check
      _
    $region35: #{actor_forward.1} parent=1 // pred_check_branch
      %67 = sbr.rel (0) target = $region37
    $region36: #{actor_forward.1} parent=1 // pred_region
      %s69 = ssub.s32 1024, 1024
      %70 = vsyncadd [#allocation10], %s69
      %s71 = sshll.u32 [#allocation9], 4
      %s72 = int_to_ptr.vmem [resolvable:$true] %s71
      %77 = dma.hbm_to_vmem [thread:$0]  %s8, 1024, %s72, [#allocation10], 64, 64, 4
    $region37: #{actor_forward.1} parent=1 // pred_fallthru
      _
    // Predicated region
    $region38: #{actor_forward.1} parent=1 // pred_check
      _
    $region39: #{actor_forward.1} parent=1 // pred_check_branch
      %79 = sbr.rel (0) target = $region41
    $region40: #{actor_forward.1} parent=1 // pred_region
      _
    $region41: #{actor_forward.1} parent=1 // pred_fallthru
      _
    // Predicated region
    $region42: #{actor_forward.1} parent=1 // pred_check
      _
    $region43: #{actor_forward.1} parent=1 // pred_check_branch
      %81 = sbr.rel (0) target = $region45
    $region44: #{actor_forward.1} parent=1 // pred_region
      %82 = dma.done [#allocation4], 1024
    $region45: #{actor_forward.1} parent=1 // pred_fallthru
      _
    // Predicated region
    $region46: #{actor_forward.1} parent=1 // pred_check
      _
    $region47: #{actor_forward.1} parent=1 // pred_check_branch
      %84 = sbr.rel (0) target = $region49
    $region48: #{actor_forward.1} parent=1 // pred_region
      %85 = dma.done [#allocation7], 1024
    $region49: #{actor_forward.1} parent=1 // pred_fallthru
      _
    // Predicated region
    $region50: #{actor_forward.1} parent=1 // pred_check
      _
    $region51: #{actor_forward.1} parent=1 // pred_check_branch
      %87 = sbr.rel (0) target = $region53
    $region52: #{actor_forward.1} parent=1 // pred_region
      %88 = dma.done [#allocation7], 1024
    $region53: #{actor_forward.1} parent=1 // pred_fallthru
      _
    // Predicated region
    $region54: #{actor_forward.1} parent=1 // pred_check
      _
    $region55: #{actor_forward.1} parent=1 // pred_check_branch
      %90 = sbr.rel (0) target = $region57
    $region56: #{actor_forward.1} parent=1 // pred_region
      %91 = dma.done [#allocation10], 1024
    $region57: #{actor_forward.1} parent=1 // pred_fallthru
      _
    %s93 = sld [smem:[#allocation2]]
    %v94 = vld [vmem:[%s1] sm:$0xf]
    %v95 = vld [vmem:[#allocation3] sm:$0xf]
    %v96 = vld [vmem:[#allocation3 + $0x4] sm:$0xf]
    %v97 = vld [vmem:[#allocation3 + $0x8] sm:$0xf]
    %v98 = vld [vmem:[#allocation3 + $0xc] sm:$0xf]
    %v99 = vld [vmem:[#allocation3 + $0x10] sm:$0xf]
    %v100 = vld [vmem:[#allocation3 + $0x14] sm:$0xf]
    %v101 = vld [vmem:[#allocation3 + $0x18] sm:$0xf]
    %v102 = vld [vmem:[#allocation3 + $0x1c] sm:$0xf]
    %v103 = vld [vmem:[#allocation3 + $0x20] sm:$0xf]
    %v104 = vld [vmem:[#allocation3 + $0x24] sm:$0xf]
    %v105 = vld [vmem:[#allocation3 + $0x28] sm:$0xf]
    %v106 = vld [vmem:[#allocation3 + $0x2c] sm:$0xf]
    %v107 = vld [vmem:[#allocation3 + $0x30] sm:$0xf]
    %v108 = vld [vmem:[#allocation3 + $0x34] sm:$0xf]
    %v109 = vld [vmem:[#allocation3 + $0x38] sm:$0xf]
    %v110 = vld [vmem:[#allocation3 + $0x3c] sm:$0xf]
    %v111 = vld [vmem:[%s3] sm:$0x1]
    %v113 = vlaneseq
    %v114 = vshrl.u32 %v113, 7
    %v115 = vsub.s32 0, %v114
    %v116 = vrot.slane %v111, %v115
    %v134 = vunpack.c.l.b16 %v95
    %v135 = vunpack.c.l.b16 %v96
    %v136 = vunpack.c.l.b16 %v97
    %v137 = vunpack.c.l.b16 %v98
    %v138 = vunpack.c.l.b16 %v99
    %v139 = vunpack.c.l.b16 %v100
    %v140 = vunpack.c.l.b16 %v101
    %v141 = vunpack.c.l.b16 %v102
    %v142 = vunpack.c.l.b16 %v103
    %v143 = vunpack.c.l.b16 %v104
    %v144 = vunpack.c.l.b16 %v105
    %v145 = vunpack.c.l.b16 %v106
    %v146 = vunpack.c.l.b16 %v107
    %v147 = vunpack.c.l.b16 %v108
    %v148 = vunpack.c.l.b16 %v109
    %v149 = vunpack.c.l.b16 %v110
    %v150 = vpack.c.b16 %v135, %v134
    %v151 = vpack.c.b16 %v137, %v136
    %v152 = vpack.c.b16 %v139, %v138
    %v153 = vpack.c.b16 %v141, %v140
    %v154 = vpack.c.b16 %v143, %v142
    %v155 = vpack.c.b16 %v145, %v144
    %v156 = vpack.c.b16 %v147, %v146
    %v157 = vpack.c.b16 %v149, %v148
    %166 = vmatprep.subr.bf16.mxu0 0
    %167 = vmatpush1.bf16.msra.mxu0 %v150
    %168 = vmatprep.subr.bf16.mxu0 0
    %169 = vmatpush1.bf16.msra.mxu0 %v151
    %170 = vmatprep.subr.bf16.mxu0 0
    %171 = vmatpush1.bf16.msra.mxu0 %v152
    %172 = vmatprep.subr.bf16.mxu0 0
    %173 = vmatpush1.bf16.msra.mxu0 %v153
    %174 = vmatprep.subr.bf16.mxu0 0
    %175 = vmatpush1.bf16.msra.mxu0 %v154
    %176 = vmatprep.subr.bf16.mxu0 0
    %177 = vmatpush1.bf16.msra.mxu0 %v155
    %178 = vmatprep.subr.bf16.mxu0 0
    %179 = vmatpush1.bf16.msra.mxu0 %v156
    %180 = vmatprep.subr.bf16.mxu0 0
    %181 = vmatpush1.bf16.msra.mxu0 %v157
    %182 = vmatprep.subr.bf16.mxu0 0
    %183 = vmatpush1.bf16.msra.mxu0 0
    %184 = vmatprep.subr.bf16.mxu0 0
    %185 = vmatpush1.bf16.msra.mxu0 0
    %186 = vmatprep.subr.bf16.mxu0 0
    %187 = vmatpush1.bf16.msra.mxu0 0
    %188 = vmatprep.subr.bf16.mxu0 0
    %189 = vmatpush1.bf16.msra.mxu0 0
    %190 = vmatprep.subr.bf16.mxu0 0
    %191 = vmatpush1.bf16.msra.mxu0 0
    %192 = vmatprep.subr.bf16.mxu0 0
    %193 = vmatpush1.bf16.msra.mxu0 0
    %194 = vmatprep.subr.bf16.mxu0 0
    %195 = vmatpush1.bf16.msra.mxu0 0
    %196 = vmatprep.subr.bf16.mxu0 0
    %197 = vmatpush1.bf16.msra.mxu0 0
    %198 = vmatprep.mubr.bf16.mxu0 0
    %199 = vmatmul.mubr.bf16.gmra.mrb[0].mxu0 %v94
    %v200 = vpop.f32.mrb[0].mxu0
    %v201 = vadd.f32 %v116, %v200
    %v202 = vpop.f32.mrb[0].mxu0
    %v203 = vpop.f32.mrb[0].mxu0
    %v204 = vpop.f32.mrb[0].mxu0
    %205 = vdwg.mxu0
    %v206 = vmax.f32 %v201, 0.0
    %v207 = vpack.c.bf16 %v206, %v206
    %v208 = vld [vmem:[#allocation6] sm:$0xf]
    %v209 = vld [vmem:[#allocation6 + $0x4] sm:$0xf]
    %v210 = vld [vmem:[#allocation6 + $0x8] sm:$0xf]
    %v211 = vld [vmem:[#allocation6 + $0xc] sm:$0xf]
    %v212 = vld [vmem:[#allocation6 + $0x10] sm:$0xf]
    %v213 = vld [vmem:[#allocation6 + $0x14] sm:$0xf]
    %v214 = vld [vmem:[#allocation6 + $0x18] sm:$0xf]
    %v215 = vld [vmem:[#allocation6 + $0x1c] sm:$0xf]
    %v216 = vld [vmem:[#allocation6 + $0x20] sm:$0xf]
    %v217 = vld [vmem:[#allocation6 + $0x24] sm:$0xf]
    %v218 = vld [vmem:[#allocation6 + $0x28] sm:$0xf]
    %v219 = vld [vmem:[#allocation6 + $0x2c] sm:$0xf]
    %v220 = vld [vmem:[#allocation6 + $0x30] sm:$0xf]
    %v221 = vld [vmem:[#allocation6 + $0x34] sm:$0xf]
    %v222 = vld [vmem:[#allocation6 + $0x38] sm:$0xf]
    %v223 = vld [vmem:[#allocation6 + $0x3c] sm:$0xf]
    %v224 = vld [vmem:[%s5] sm:$0x1]
    %v226 = vlaneseq
    %v227 = vshrl.u32 %v226, 7
    %v228 = vsub.s32 0, %v227
    %v229 = vrot.slane %v224, %v228
    %v247 = vunpack.c.l.b16 %v208
    %v248 = vunpack.c.l.b16 %v209
    %v249 = vunpack.c.l.b16 %v210
    %v250 = vunpack.c.l.b16 %v211
    %v251 = vunpack.c.l.b16 %v212
    %v252 = vunpack.c.l.b16 %v213
    %v253 = vunpack.c.l.b16 %v214
    %v254 = vunpack.c.l.b16 %v215
    %v255 = vunpack.c.l.b16 %v216
    %v256 = vunpack.c.l.b16 %v217
    %v257 = vunpack.c.l.b16 %v218
    %v258 = vunpack.c.l.b16 %v219
    %v259 = vunpack.c.l.b16 %v220
    %v260 = vunpack.c.l.b16 %v221
    %v261 = vunpack.c.l.b16 %v222
    %v262 = vunpack.c.l.b16 %v223
    %v263 = vpack.c.b16 %v248, %v247
    %v264 = vpack.c.b16 %v250, %v249
    %v265 = vpack.c.b16 %v252, %v251
    %v266 = vpack.c.b16 %v254, %v253
    %v267 = vpack.c.b16 %v256, %v255
    %v268 = vpack.c.b16 %v258, %v257
    %v269 = vpack.c.b16 %v260, %v259
    %v270 = vpack.c.b16 %v262, %v261
    %279 = vmatprep.subr.bf16.mxu0 0
    %280 = vmatpush1.bf16.msra.mxu0 %v263
    %281 = vmatprep.subr.bf16.mxu0 0
    %282 = vmatpush1.bf16.msra.mxu0 %v264
    %283 = vmatprep.subr.bf16.mxu0 0
    %284 = vmatpush1.bf16.msra.mxu0 %v265
    %285 = vmatprep.subr.bf16.mxu0 0
    %286 = vmatpush1.bf16.msra.mxu0 %v266
    %287 = vmatprep.subr.bf16.mxu0 0
    %288 = vmatpush1.bf16.msra.mxu0 %v267
    %289 = vmatprep.subr.bf16.mxu0 0
    %290 = vmatpush1.bf16.msra.mxu0 %v268
    %291 = vmatprep.subr.bf16.mxu0 0
    %292 = vmatpush1.bf16.msra.mxu0 %v269
    %293 = vmatprep.subr.bf16.mxu0 0
    %294 = vmatpush1.bf16.msra.mxu0 %v270
    %295 = vmatprep.subr.bf16.mxu0 0
    %296 = vmatpush1.bf16.msra.mxu0 0
    %297 = vmatprep.subr.bf16.mxu0 0
    %298 = vmatpush1.bf16.msra.mxu0 0
    %299 = vmatprep.subr.bf16.mxu0 0
    %300 = vmatpush1.bf16.msra.mxu0 0
    %301 = vmatprep.subr.bf16.mxu0 0
    %302 = vmatpush1.bf16.msra.mxu0 0
    %303 = vmatprep.subr.bf16.mxu0 0
    %304 = vmatpush1.bf16.msra.mxu0 0
    %305 = vmatprep.subr.bf16.mxu0 0
    %306 = vmatpush1.bf16.msra.mxu0 0
    %307 = vmatprep.subr.bf16.mxu0 0
    %308 = vmatpush1.bf16.msra.mxu0 0
    %309 = vmatprep.subr.bf16.mxu0 0
    %310 = vmatpush1.bf16.msra.mxu0 0
    %311 = vmatprep.mubr.bf16.mxu0 0
    %312 = vmatmul.mubr.bf16.gmra.mrb[0].mxu0 %v207
    %v313 = vpop.f32.mrb[0].mxu0
    %v314 = vadd.f32 %v229, %v313
    %v315 = vpop.f32.mrb[0].mxu0
    %v316 = vpop.f32.mrb[0].mxu0
    %v317 = vpop.f32.mrb[0].mxu0
    %318 = vdwg.mxu0
    %v319 = vmax.f32 %v314, 0.0
    %v320 = vpack.c.bf16 %v319, %v319
    %v321 = vld [vmem:[#allocation8] sm:$0xf]
    %v322 = vld [vmem:[#allocation8 + $0x4] sm:$0xf]
    %v323 = vld [vmem:[#allocation8 + $0x8] sm:$0xf]
    %v324 = vld [vmem:[#allocation8 + $0xc] sm:$0xf]
    %v325 = vld [vmem:[#allocation8 + $0x10] sm:$0xf]
    %v326 = vld [vmem:[#allocation8 + $0x14] sm:$0xf]
    %v327 = vld [vmem:[#allocation8 + $0x18] sm:$0xf]
    %v328 = vld [vmem:[#allocation8 + $0x1c] sm:$0xf]
    %v329 = vld [vmem:[#allocation8 + $0x20] sm:$0xf]
    %v330 = vld [vmem:[#allocation8 + $0x24] sm:$0xf]
    %v331 = vld [vmem:[#allocation8 + $0x28] sm:$0xf]
    %v332 = vld [vmem:[#allocation8 + $0x2c] sm:$0xf]
    %v333 = vld [vmem:[#allocation8 + $0x30] sm:$0xf]
    %v334 = vld [vmem:[#allocation8 + $0x34] sm:$0xf]
    %v335 = vld [vmem:[#allocation8 + $0x38] sm:$0xf]
    %v336 = vld [vmem:[#allocation8 + $0x3c] sm:$0xf]
    %v337 = vld [vmem:[%s7] sm:$0x1]
    %v339 = vlaneseq
    %v340 = vshrl.u32 %v339, 7
    %v341 = vsub.s32 0, %v340
    %v342 = vrot.slane %v337, %v341
    %v360 = vunpack.c.l.b16 %v321
    %v361 = vunpack.c.l.b16 %v322
    %v362 = vunpack.c.l.b16 %v323
    %v363 = vunpack.c.l.b16 %v324
    %v364 = vunpack.c.l.b16 %v325
    %v365 = vunpack.c.l.b16 %v326
    %v366 = vunpack.c.l.b16 %v327
    %v367 = vunpack.c.l.b16 %v328
    %v368 = vunpack.c.l.b16 %v329
    %v369 = vunpack.c.l.b16 %v330
    %v370 = vunpack.c.l.b16 %v331
    %v371 = vunpack.c.l.b16 %v332
    %v372 = vunpack.c.l.b16 %v333
    %v373 = vunpack.c.l.b16 %v334
    %v374 = vunpack.c.l.b16 %v335
    %v375 = vunpack.c.l.b16 %v336
    %v376 = vpack.c.b16 %v361, %v360
    %v377 = vpack.c.b16 %v363, %v362
    %v378 = vpack.c.b16 %v365, %v364
    %v379 = vpack.c.b16 %v367, %v366
    %v380 = vpack.c.b16 %v369, %v368
    %v381 = vpack.c.b16 %v371, %v370
    %v382 = vpack.c.b16 %v373, %v372
    %v383 = vpack.c.b16 %v375, %v374
    %392 = vmatprep.subr.bf16.mxu0 0
    %393 = vmatpush1.bf16.msra.mxu0 %v376
    %394 = vmatprep.subr.bf16.mxu0 0
    %395 = vmatpush1.bf16.msra.mxu0 %v377
    %396 = vmatprep.subr.bf16.mxu0 0
    %397 = vmatpush1.bf16.msra.mxu0 %v378
    %398 = vmatprep.subr.bf16.mxu0 0
    %399 = vmatpush1.bf16.msra.mxu0 %v379
    %400 = vmatprep.subr.bf16.mxu0 0
    %401 = vmatpush1.bf16.msra.mxu0 %v380
    %402 = vmatprep.subr.bf16.mxu0 0
    %403 = vmatpush1.bf16.msra.mxu0 %v381
    %404 = vmatprep.subr.bf16.mxu0 0
    %405 = vmatpush1.bf16.msra.mxu0 %v382
    %406 = vmatprep.subr.bf16.mxu0 0
    %407 = vmatpush1.bf16.msra.mxu0 %v383
    %408 = vmatprep.subr.bf16.mxu0 0
    %409 = vmatpush1.bf16.msra.mxu0 0
    %410 = vmatprep.subr.bf16.mxu0 0
    %411 = vmatpush1.bf16.msra.mxu0 0
    %412 = vmatprep.subr.bf16.mxu0 0
    %413 = vmatpush1.bf16.msra.mxu0 0
    %414 = vmatprep.subr.bf16.mxu0 0
    %415 = vmatpush1.bf16.msra.mxu0 0
    %416 = vmatprep.subr.bf16.mxu0 0
    %417 = vmatpush1.bf16.msra.mxu0 0
    %418 = vmatprep.subr.bf16.mxu0 0
    %419 = vmatpush1.bf16.msra.mxu0 0
    %420 = vmatprep.subr.bf16.mxu0 0
    %421 = vmatpush1.bf16.msra.mxu0 0
    %422 = vmatprep.subr.bf16.mxu0 0
    %423 = vmatpush1.bf16.msra.mxu0 0
    %424 = vmatprep.mubr.bf16.mxu0 0
    %425 = vmatmul.mubr.bf16.gmra.mrb[0].mxu0 %v320
    %v426 = vpop.f32.mrb[0].mxu0
    %v427 = vadd.f32 %v342, %v426
    %v428 = vpop.f32.mrb[0].mxu0
    %v429 = vpop.f32.mrb[0].mxu0
    %v430 = vpop.f32.mrb[0].mxu0
    %431 = vdwg.mxu0
    %v432 = vmax.f32 %v427, 0.0
    %v433 = vpack.c.bf16 %v432, %v432
    %v434 = vld [vmem:[#allocation9] sm:$0xf]
    %v435 = vld [vmem:[#allocation9 + $0x4] sm:$0xf]
    %v436 = vld [vmem:[#allocation9 + $0x8] sm:$0xf]
    %v437 = vld [vmem:[#allocation9 + $0xc] sm:$0xf]
    %v438 = vld [vmem:[#allocation9 + $0x10] sm:$0xf]
    %v439 = vld [vmem:[#allocation9 + $0x14] sm:$0xf]
    %v440 = vld [vmem:[#allocation9 + $0x18] sm:$0xf]
    %v441 = vld [vmem:[#allocation9 + $0x1c] sm:$0xf]
    %v442 = vld [vmem:[#allocation9 + $0x20] sm:$0xf]
    %v443 = vld [vmem:[#allocation9 + $0x24] sm:$0xf]
    %v444 = vld [vmem:[#allocation9 + $0x28] sm:$0xf]
    %v445 = vld [vmem:[#allocation9 + $0x2c] sm:$0xf]
    %v446 = vld [vmem:[#allocation9 + $0x30] sm:$0xf]
    %v447 = vld [vmem:[#allocation9 + $0x34] sm:$0xf]
    %v448 = vld [vmem:[#allocation9 + $0x38] sm:$0xf]
    %v449 = vld [vmem:[#allocation9 + $0x3c] sm:$0xf]
    %v450 = vld [vmem:[%s9] sm:$0x1]
    %v452 = vlaneseq
    %v453 = vshrl.u32 %v452, 7
    %v454 = vsub.s32 0, %v453
    %v455 = vrot.slane %v450, %v454
    %v473 = vunpack.c.l.b16 %v434
    %v474 = vunpack.c.l.b16 %v435
    %v475 = vunpack.c.l.b16 %v436
    %v476 = vunpack.c.l.b16 %v437
    %v477 = vunpack.c.l.b16 %v438
    %v478 = vunpack.c.l.b16 %v439
    %v479 = vunpack.c.l.b16 %v440
    %v480 = vunpack.c.l.b16 %v441
    %v481 = vunpack.c.l.b16 %v442
    %v482 = vunpack.c.l.b16 %v443
    %v483 = vunpack.c.l.b16 %v444
    %v484 = vunpack.c.l.b16 %v445
    %v485 = vunpack.c.l.b16 %v446
    %v486 = vunpack.c.l.b16 %v447
    %v487 = vunpack.c.l.b16 %v448
    %v488 = vunpack.c.l.b16 %v449
    %v489 = vpack.c.b16 %v474, %v473
    %v490 = vpack.c.b16 %v476, %v475
    %v491 = vpack.c.b16 %v478, %v477
    %v492 = vpack.c.b16 %v480, %v479
    %v493 = vpack.c.b16 %v482, %v481
    %v494 = vpack.c.b16 %v484, %v483
    %v495 = vpack.c.b16 %v486, %v485
    %v496 = vpack.c.b16 %v488, %v487
    %505 = vmatprep.subr.bf16.mxu0 0
    %506 = vmatpush1.bf16.msra.mxu0 %v489
    %507 = vmatprep.subr.bf16.mxu0 0
    %508 = vmatpush1.bf16.msra.mxu0 %v490
    %509 = vmatprep.subr.bf16.mxu0 0
    %510 = vmatpush1.bf16.msra.mxu0 %v491
    %511 = vmatprep.subr.bf16.mxu0 0
    %512 = vmatpush1.bf16.msra.mxu0 %v492
    %513 = vmatprep.subr.bf16.mxu0 0
    %514 = vmatpush1.bf16.msra.mxu0 %v493
    %515 = vmatprep.subr.bf16.mxu0 0
    %516 = vmatpush1.bf16.msra.mxu0 %v494
    %517 = vmatprep.subr.bf16.mxu0 0
    %518 = vmatpush1.bf16.msra.mxu0 %v495
    %519 = vmatprep.subr.bf16.mxu0 0
    %520 = vmatpush1.bf16.msra.mxu0 %v496
    %521 = vmatprep.subr.bf16.mxu0 0
    %522 = vmatpush1.bf16.msra.mxu0 0
    %523 = vmatprep.subr.bf16.mxu0 0
    %524 = vmatpush1.bf16.msra.mxu0 0
    %525 = vmatprep.subr.bf16.mxu0 0
    %526 = vmatpush1.bf16.msra.mxu0 0
    %527 = vmatprep.subr.bf16.mxu0 0
    %528 = vmatpush1.bf16.msra.mxu0 0
    %529 = vmatprep.subr.bf16.mxu0 0
    %530 = vmatpush1.bf16.msra.mxu0 0
    %531 = vmatprep.subr.bf16.mxu0 0
    %532 = vmatpush1.bf16.msra.mxu0 0
    %533 = vmatprep.subr.bf16.mxu0 0
    %534 = vmatpush1.bf16.msra.mxu0 0
    %535 = vmatprep.subr.bf16.mxu0 0
    %536 = vmatpush1.bf16.msra.mxu0 0
    %537 = vmatprep.mubr.bf16.mxu0 0
    %538 = vmatmul.mubr.bf16.gmra.mrb[0].mxu0 %v433
    %v539 = vpop.f32.mrb[0].mxu0
    %v540 = vadd.f32 %v455, %v539
    %v541 = vpop.f32.mrb[0].mxu0
    %v542 = vpop.f32.mrb[0].mxu0
    %v543 = vpop.f32.mrb[0].mxu0
    %544 = vdwg.mxu0
    %v545 = vtanh.pop %v540
    %v546 = vstv %s93
    %v547 = vmul.f32 %v546, %v545
    %548 = vst [vmem:[#allocation11] sm:$0xff] %v547
    // Predicated region
    $region58: #{actor_forward.1} parent=1 // pred_check
      _
    $region59: #{actor_forward.1} parent=1 // pred_check_branch
      %550 = sbr.rel (0) target = $region61
    $region60: #{actor_forward.1} parent=1 // pred_region
      %s552 = ssub.s32 128, 128
      %553 = vsyncadd [#allocation5], %s552
      %s555 = sshll.u32 [#allocation11], 4
      %s556 = int_to_ptr.vmem [resolvable:$true] %s555
      %558 = dma.vmem_to_hbm [thread:$0]  %s556, 128, %s10, [#allocation5]
    $region61: #{actor_forward.1} parent=1 // pred_fallthru
      _
    // Predicated region
    $region62: #{actor_forward.1} parent=1 // pred_check
      _
    $region63: #{actor_forward.1} parent=1 // pred_check_branch
      %560 = sbr.rel (0) target = $region65
    $region64: #{actor_forward.1} parent=1 // pred_region
      %561 = dma.done [#allocation5], 128
    $region65: #{actor_forward.1} parent=1 // pred_fallthru
      _
    %562 = vsyncpa [#allocation4], 1
    %563 = vsyncpa [#allocation7], 1
    %564 = vsyncpa [#allocation10], 1
    %565 = vsyncpa [#allocation5], 1

</llo_original>
